<compile_context>
chip_gen: v6e
topology: v6e:2x2x1
jax: 0.10.0
libtpu: 0.0.40
codegen_flags: <defaults>
</compile_context>

<pallas_src>
import functools

import jax
import jax.numpy as jnp
from jax import lax
from jax.experimental import pallas as pl
from jax.experimental.pallas import tpu as pltpu

_LANES = 128
_MAX_BLOCK_ROWS = 1024  # 512 KiB f32 per buffer: fits default scoped VMEM on v5e/v6e/v7x.


def _hash_u32(x):
    """lowbias32 integer hash: full-avalanche mix of a uint32 counter."""
    x = x ^ (x >> 16)
    x = x * jnp.uint32(0x7FEB352D)
    x = x ^ (x >> 15)
    x = x * jnp.uint32(0x846CA68B)
    x = x ^ (x >> 16)
    return x


def _gaussian_noise_kernel(seed_ref, x_ref, o_ref, *, scale):
    block_rows, lanes = x_ref.shape
    half = (block_rows + 1) // 2  # one Box-Muller pair covers two output rows

    # Globally-unique pair counters: block offset + in-block position.
    i = pl.program_id(0)
    row = lax.broadcasted_iota(jnp.int32, (half, lanes), 0)
    col = lax.broadcasted_iota(jnp.int32, (half, lanes), 1)
    pair_idx = ((i * half + row) * lanes + col).astype(jnp.uint32)

    # Mix the user seed into the hash key (no per-block seed reuse / adjacency).
    key = (seed_ref[0].astype(jnp.uint32) * jnp.uint32(0x9E3779B9)) ^ jnp.uint32(0x85EBCA6B)

    c1 = pair_idx * jnp.uint32(2)
    c2 = c1 + jnp.uint32(1)
    bits1 = _hash_u32(c1 ^ key)
    bits2 = _hash_u32(c2 ^ key)

    # 24-bit uniforms; u1 in (0, 1] keeps log finite, u2 in [0, 1).
    inv24 = jnp.float32(1.0 / (1 << 24))
    u1 = ((bits1 >> 8).astype(jnp.int32).astype(jnp.float32) + 1.0) * inv24
    u2 = (bits2 >> 8).astype(jnp.int32).astype(jnp.float32) * inv24

    # Box-Muller, using both outputs of each pair (halves EUP work per element).
    r = jnp.sqrt(jnp.float32(-2.0) * jnp.log(u1))
    theta = jnp.float32(2.0 * jnp.pi) * u2
    z0 = r * jnp.cos(theta)
    z1 = r * jnp.sin(theta)
    z = jnp.concatenate([z0, z1], axis=0)
    if 2 * half != block_rows:  # odd tiny block: drop the surplus row (static slice)
        z = z[:block_rows]

    noise = z * jnp.float32(scale)
    o_ref[...] = (x_ref[...].astype(jnp.float32) + noise).astype(o_ref.dtype)


def gaussian_noise(x, scale, seed=0):
    """Pallas equivalent of GaussianNoise(scale).forward(x)."""
    orig_shape = x.shape
    orig_dtype = x.dtype

    flat = x.reshape(-1)
    n = flat.size

    # Pad only to the 128-lane boundary (at most 127 elements), not a full block.
    pad = (-n) % _LANES
    if pad:
        flat = jnp.pad(flat, (0, pad))
    rows = flat.size // _LANES
    x2d = flat.reshape(rows, _LANES)

    # Block rows: as large as possible (multiple of 8), VMEM-safe on all gens.
    if rows % 8 == 0:
        block_rows = min(_MAX_BLOCK_ROWS, rows)
    elif rows > 8:
        block_rows = min(_MAX_BLOCK_ROWS, (rows // 8) * 8)  # last block is partial (masked)
    else:
        block_rows = rows  # tiny input: full-dim block

    grid = (pl.cdiv(rows, block_rows),)
    seed_arr = jnp.array([seed], dtype=jnp.int32)
    kernel = functools.partial(_gaussian_noise_kernel, scale=float(scale))
    # TODO(synk): scale is baked in statically (recompile per distinct scale);
    # pass it as an SMEM scalar if many scales are used at runtime.

    out2d = pl.pallas_call(
        kernel,
        out_shape=jax.ShapeDtypeStruct((rows, _LANES), orig_dtype),
        grid_spec=pltpu.PrefetchScalarGridSpec(
            num_scalar_prefetch=1,
            grid=grid,
            in_specs=[
                pl.BlockSpec((block_rows, _LANES), lambda i, seed: (i, 0)),
            ],
            out_specs=pl.BlockSpec((block_rows, _LANES), lambda i, seed: (i, 0)),
        ),
        compiler_params=pltpu.CompilerParams(
            dimension_semantics=("parallel",),
        ),
    )(seed_arr, x2d)

    out_flat = out2d.reshape(-1)
    if pad:
        out_flat = out_flat[:n]
    return out_flat.reshape(orig_shape)


if __name__ == "__main__":
    key = jax.random.PRNGKey(0)
    # NCHW input, matching the PyTorch convention.
    x = jax.random.normal(key, (2, 4, 16, 16), dtype=jnp.float32)
    scale = 0.1

    out = gaussian_noise(x, scale, seed=0)
    out = jax.block_until_ready(out)

    assert out.shape == x.shape
    assert out.dtype == x.dtype

    noise = out - x
    assert bool(jnp.all(jnp.isfinite(noise)))
    max_abs = float(jnp.max(jnp.abs(noise)))
    assert 0.0 < max_abs < 1.0  # scale=0.1 -> |noise| should be small but nonzero
    # Loose distribution sanity checks (2048 samples of N(0, scale^2)).
    assert abs(float(jnp.mean(noise))) < 0.03
    assert 0.05 < float(jnp.std(noise)) < 0.2

    print("KERNEL_OK")
</pallas_src>

<mosaic_0001>
module attributes {stable_mosaic.version = 11 : i64} {
  func.func @_gaussian_noise_kernel(%arg0: i32, %arg1: memref<1xi32, #tpu.memory_space<smem>>, %arg2: memref<16x128xf32, #tpu.memory_space<vmem>>, %arg3: memref<16x128xf32, #tpu.memory_space<vmem>>) attributes {dimension_semantics = [#tpu.dimension_semantics<parallel>], iteration_bounds = array<i64: 1>, scalar_prefetch = 1 : i64, scratch_operands = 0 : i64, tpu.core_type = #tpu.core_type<tc>, window_params = [{transform_indices = @transform_0, window_bounds = array<i64: 16, 128>}, {transform_indices = @transform_1, window_bounds = array<i64: 16, 128>}]} {
    %0 = tpu.iota {dimensions = array<i32: 0>} : vector<8x128xi32>
    %1 = tpu.iota {dimensions = array<i32: 1>} : vector<8x128xi32>
    %c8_i32 = arith.constant 8 : i32
    %2 = arith.muli %arg0, %c8_i32 : i32
    %3 = vector.broadcast %2 : i32 to vector<8x128xi32>
    %4 = arith.addi %3, %0 : vector<8x128xi32>
    %c128_i32 = arith.constant 128 : i32
    %5 = vector.broadcast %c128_i32 : i32 to vector<8x128xi32>
    %6 = arith.muli %4, %5 : vector<8x128xi32>
    %7 = arith.addi %6, %1 : vector<8x128xi32>
    %c0 = arith.constant 0 : index
    %8 = memref.load %arg1[%c0] : memref<1xi32, #tpu.memory_space<smem>>
    %c-1640531527_i32 = arith.constant -1640531527 : i32
    %9 = arith.muli %8, %c-1640531527_i32 : i32
    %c-2048144789_i32 = arith.constant -2048144789 : i32
    %10 = arith.xori %9, %c-2048144789_i32 : i32
    %c2_i32 = arith.constant 2 : i32
    %11 = vector.broadcast %c2_i32 : i32 to vector<8x128xi32>
    %12 = arith.muli %7, %11 : vector<8x128xi32>
    %c1_i32 = arith.constant 1 : i32
    %13 = vector.broadcast %c1_i32 : i32 to vector<8x128xi32>
    %14 = arith.addi %12, %13 : vector<8x128xi32>
    %15 = vector.broadcast %10 : i32 to vector<8x128xi32>
    %16 = arith.xori %12, %15 : vector<8x128xi32>
    %c16_i32 = arith.constant 16 : i32
    %17 = vector.broadcast %c16_i32 : i32 to vector<8x128xi32>
    %18 = arith.shrui %16, %17 : vector<8x128xi32>
    %19 = arith.xori %16, %18 : vector<8x128xi32>
    %c2146121005_i32 = arith.constant 2146121005 : i32
    %20 = vector.broadcast %c2146121005_i32 : i32 to vector<8x128xi32>
    %21 = arith.muli %19, %20 : vector<8x128xi32>
    %c15_i32 = arith.constant 15 : i32
    %22 = vector.broadcast %c15_i32 : i32 to vector<8x128xi32>
    %23 = arith.shrui %21, %22 : vector<8x128xi32>
    %24 = arith.xori %21, %23 : vector<8x128xi32>
    %c-2073254261_i32 = arith.constant -2073254261 : i32
    %25 = vector.broadcast %c-2073254261_i32 : i32 to vector<8x128xi32>
    %26 = arith.muli %24, %25 : vector<8x128xi32>
    %c16_i32_0 = arith.constant 16 : i32
    %27 = vector.broadcast %c16_i32_0 : i32 to vector<8x128xi32>
    %28 = arith.shrui %26, %27 : vector<8x128xi32>
    %29 = arith.xori %26, %28 : vector<8x128xi32>
    %30 = vector.broadcast %10 : i32 to vector<8x128xi32>
    %31 = arith.xori %14, %30 : vector<8x128xi32>
    %c16_i32_1 = arith.constant 16 : i32
    %32 = vector.broadcast %c16_i32_1 : i32 to vector<8x128xi32>
    %33 = arith.shrui %31, %32 : vector<8x128xi32>
    %34 = arith.xori %31, %33 : vector<8x128xi32>
    %c2146121005_i32_2 = arith.constant 2146121005 : i32
    %35 = vector.broadcast %c2146121005_i32_2 : i32 to vector<8x128xi32>
    %36 = arith.muli %34, %35 : vector<8x128xi32>
    %c15_i32_3 = arith.constant 15 : i32
    %37 = vector.broadcast %c15_i32_3 : i32 to vector<8x128xi32>
    %38 = arith.shrui %36, %37 : vector<8x128xi32>
    %39 = arith.xori %36, %38 : vector<8x128xi32>
    %c-2073254261_i32_4 = arith.constant -2073254261 : i32
    %40 = vector.broadcast %c-2073254261_i32_4 : i32 to vector<8x128xi32>
    %41 = arith.muli %39, %40 : vector<8x128xi32>
    %c16_i32_5 = arith.constant 16 : i32
    %42 = vector.broadcast %c16_i32_5 : i32 to vector<8x128xi32>
    %43 = arith.shrui %41, %42 : vector<8x128xi32>
    %44 = arith.xori %41, %43 : vector<8x128xi32>
    %c8_i32_6 = arith.constant 8 : i32
    %45 = vector.broadcast %c8_i32_6 : i32 to vector<8x128xi32>
    %46 = arith.shrui %29, %45 : vector<8x128xi32>
    %47 = arith.sitofp %46 : vector<8x128xi32> to vector<8x128xf32>
    %cst = arith.constant 1.000000e+00 : f32
    %48 = vector.broadcast %cst : f32 to vector<8x128xf32>
    %49 = arith.addf %47, %48 : vector<8x128xf32>
    %cst_7 = arith.constant 5.96046448E-8 : f32
    %50 = vector.broadcast %cst_7 : f32 to vector<8x128xf32>
    %51 = arith.mulf %49, %50 : vector<8x128xf32>
    %c8_i32_8 = arith.constant 8 : i32
    %52 = vector.broadcast %c8_i32_8 : i32 to vector<8x128xi32>
    %53 = arith.shrui %44, %52 : vector<8x128xi32>
    %54 = arith.sitofp %53 : vector<8x128xi32> to vector<8x128xf32>
    %cst_9 = arith.constant 5.96046448E-8 : f32
    %55 = vector.broadcast %cst_9 : f32 to vector<8x128xf32>
    %56 = arith.mulf %54, %55 : vector<8x128xf32>
    %57 = math.log %51 : vector<8x128xf32>
    %cst_10 = arith.constant -2.000000e+00 : f32
    %58 = vector.broadcast %cst_10 : f32 to vector<8x128xf32>
    %59 = arith.mulf %58, %57 : vector<8x128xf32>
    %60 = math.sqrt %59 : vector<8x128xf32>
    %cst_11 = arith.constant 6.28318548 : f32
    %61 = vector.broadcast %cst_11 : f32 to vector<8x128xf32>
    %62 = arith.mulf %61, %56 : vector<8x128xf32>
    %63 = math.cos %62 : vector<8x128xf32>
    %64 = arith.mulf %60, %63 : vector<8x128xf32>
    %65 = math.sin %62 : vector<8x128xf32>
    %66 = arith.mulf %60, %65 : vector<8x128xf32>
    %67 = tpu.concatenate %64, %66 in 0 : vector<8x128xf32>, vector<8x128xf32> -> vector<16x128xf32>
    %cst_12 = arith.constant 1.000000e-01 : f32
    %68 = vector.broadcast %cst_12 : f32 to vector<16x128xf32>
    %69 = arith.mulf %67, %68 : vector<16x128xf32>
    %c0_13 = arith.constant 0 : index
    %c0_14 = arith.constant 0 : index
    %70 = vector.load %arg2[%c0_13, %c0_14] : memref<16x128xf32, #tpu.memory_space<vmem>>, vector<16x128xf32>
    %71 = arith.addf %70, %69 : vector<16x128xf32>
    %c0_15 = arith.constant 0 : index
    %c0_16 = arith.constant 0 : index
    %72 = vector.load %arg3[%c0_15, %c0_16] : memref<16x128xf32, #tpu.memory_space<vmem>>, vector<16x128xf32>
    tpu.vector_store %arg3[%c0_15, %c0_16], %71 {strides = array<i32>} : memref<16x128xf32, #tpu.memory_space<vmem>>, vector<16x128xf32>,
    return
  }
  func.func @transform_0(%arg0: i32, %arg1: memref<1xi32, #tpu.memory_space<smem>>) -> (i32, i32) {
    %c0_i32 = arith.constant 0 : i32
    %c0_i32_0 = arith.constant 0 : i32
    return %arg0, %c0_i32 : i32, i32
  }
  func.func @transform_1(%arg0: i32, %arg1: memref<1xi32, #tpu.memory_space<smem>>) -> (i32, i32) {
    %c0_i32 = arith.constant 0 : i32
    %c0_i32_0 = arith.constant 0 : i32
    return %arg0, %c0_i32 : i32, i32
  }
}

</mosaic_0001>

<llo_original>
// kernel: tpu_custom_call.1
$region0: #{tpu_custom_call.1}
  #allocation0 [shape = 'u32[]', space=smem, size = 0x4, offset = 0x4, fixed_abs, tag = 'smem constant byte address 0x4 - core index']
  #allocation1 [shape = 'u32[144,128]{1,0:T(1,128)}', space=vmem, size = 0x12000, scoped, tag = 'internal scratch']
  #allocation2 [shape = 's32[1]{0}', space=sflag, size = 0x4, scoped, tag = 'scoped memory for tpu_custom_call.1']
  #allocation3 [shape = 's32[1]{0:T(128)S(6)}', space=smem, size = 0x200, scoped, tag = 'prefetched SMEM operand 0']
  %s0 = inlined_call_operand.<no memory space> [shape: s32[1], index: 0, kind: input, shape index: {}]
  %s1 = inlined_call_operand.hbm [shape: f32[16,128], index: 1, kind: input, shape index: {}]
  %s2 = inlined_call_operand.hbm [shape: f32[16,128], index: 2, kind: output, shape index: {}]
  %s3 = sld [smem:[#allocation0]]
  $region18: #{tpu_custom_call.1} parent=0
    _
  %s5 = ssub.s32 1, %s3
  %s6 = scalar_select 0, %s5, %s3
  %7 = sst [smem:[#allocation3]] %s0
  $region1: #{tpu_custom_call.1} parent=0
    #allocation4 [shape = 'u8[8192]{0}', space=vmem, size = 0x2000, scoped, tag = 'input window, operand 1, single buffered']
    #allocation5 [shape = 's32[1]{0}', space=sflag, size = 0x4, scoped, tag = 'scoped memory for tpu_custom_call.1']
    #allocation6 [shape = 's32[1]{0}', space=sflag, size = 0x4, scoped, tag = 'scoped memory for tpu_custom_call.1']
    #allocation7 [shape = 'u8[8192]{0}', space=vmem, size = 0x2000, scoped, tag = 'output window, operand 0, single buffered']
    %8 = vsyncpa [#allocation5], 0
    %9 = vsyncpa [#allocation6], 0
    // Predicated region
    $region2: #{tpu_custom_call.1} parent=1 // pred_check
      _
    $region3: #{tpu_custom_call.1} parent=1 // pred_check_branch
      %11 = sbr.rel (0) target = $region5
    $region4: #{tpu_custom_call.1} parent=1 // pred_region
      %s13 = ssub.s32 256, 256
      %14 = vsyncadd [#allocation5], %s13
      %s15 = sshll.u32 [#allocation4], 4
      %s16 = int_to_ptr.vmem [resolvable:$true] %s15
      %21 = dma.hbm_to_vmem [thread:$0]  %s1, 256, %s16, [#allocation5], 128, 128, 8
    $region5: #{tpu_custom_call.1} parent=1 // pred_fallthru
      _
    // Predicated region
    $region6: #{tpu_custom_call.1} parent=1 // pred_check
      _
    $region7: #{tpu_custom_call.1} parent=1 // pred_check_branch
      %23 = sbr.rel (0) target = $region9
    $region8: #{tpu_custom_call.1} parent=1 // pred_region
      %24 = dma.done [#allocation5], 256
    $region9: #{tpu_custom_call.1} parent=1 // pred_fallthru
      _
    %v25 = vlaneseq
    %v26 = vshrl.u32 %v25, 7
    %v27 = vlaneseq
    %v28 = vand.u32 %v27, 127
    %s29 = smul.u32 0, 8
    %v30 = vstv %s29
    %v31 = vadd.s32 %v30, %v26
    %v32 = vmul.u32 %v31, 128
    %v33 = vadd.s32 %v32, %v28
    %s34 = sld [smem:[#allocation3]]
    %s35 = smul.u32 %s34, 2654435769
    %s36 = sxor.u32 %s35, 2246822507
    %v37 = vmul.u32 %v33, 2
    %v38 = vadd.s32 %v37, 1
    %v39 = vstv %s36
    %v40 = vxor.u32 %v37, %v39
    %v41 = vshrl.u32 %v40, 16
    %v42 = vxor.u32 %v40, %v41
    %v43 = vmul.u32 %v42, 2146121005
    %v44 = vshrl.u32 %v43, 15
    %v45 = vxor.u32 %v43, %v44
    %v46 = vmul.u32 %v45, 2221713035
    %v47 = vshrl.u32 %v46, 16
    %v48 = vxor.u32 %v46, %v47
    %v49 = vxor.u32 %v38, %v39
    %v50 = vshrl.u32 %v49, 16
    %v51 = vxor.u32 %v49, %v50
    %v52 = vmul.u32 %v51, 2146121005
    %v53 = vshrl.u32 %v52, 15
    %v54 = vxor.u32 %v52, %v53
    %v55 = vmul.u32 %v54, 2221713035
    %v56 = vshrl.u32 %v55, 16
    %v57 = vxor.u32 %v55, %v56
    %v58 = vshrl.u32 %v48, 8
    %v59 = vcvt.s32.f32 %v58
    %v60 = vadd.f32 %v59, 1.0
    %v61 = vmul.f32 %v60, 5.9604645e-08
    %v62 = vshrl.u32 %v57, 8
    %v63 = vcvt.s32.f32 %v62
    %v64 = vmul.f32 %v63, 5.9604645e-08
    %v65 = vlog2.pop %v61
    %v66 = vmul.f32 %v65, 0.6931472
    %v67 = vmul.f32 %v66, -2.0
    %v68 = vrsqrt.pop %v67
    %v69 = vmul.f32 %v67, %v68
    %vm70 = vcmp.eq.f32.partialorder %v67, inf
    %v71 = vsel %vm70, %v67, %v69
    %vm72 = vcmp.eq.f32.partialorder %v67, 0.0
    %v73 = vand.u32 %v67, 2147483648
    %v74 = vsel %vm72, %v73, %v71
    %v75 = vmul.f32 %v64, 6.2831855
    %v76 = vand.u32 2147483647, %v75
    %vm77 = vcmp.le.f32.partialorder %v76, 0.7853982
    %vm78 = vcmp.lt.s32.totalorder %v75, 0
    %v79 = vand.u32 %v75, 2139095040
    %v80 = vshrl.u32 %v79, 23
    %v81 = vsub.s32 %v80, 127
    %v82 = vand.u32 2147483647, %v75
    %v83 = vand.u32 %v82, 8388607
    %v84 = vor.u32 %v83, 8388608
    %v85 = vsub.s32 0, %v84
    %v86 = vadd.s32 %v81, 1
    %vm87 = vcmp.gt.s32.totalorder %v86, 0
    %v88 = vsel %vm87, %v86, 0
    %v89 = vshrl.u32 %v88, 5
    %v90 = vand.u32 %v88, 31
    %v91 = vsub.s32 32, %v90
    %v92 = vshrl.u32 683565275, %v91
    %v93 = vshll.u32 683565275, %v90
    %v94 = vshrl.u32 2475754826, %v91
    %v95 = vor.u32 %v93, %v94
    %v96 = vshll.u32 2475754826, %v90
    %v97 = vshrl.u32 2131351028, %v91
    %v98 = vor.u32 %v96, %v97
    %v99 = vshll.u32 2131351028, %v90
    %v100 = vshrl.u32 2102212464, %v91
    %v101 = vor.u32 %v99, %v100
    %v102 = vshll.u32 2102212464, %v90
    %v103 = vshrl.u32 920167782, %v91
    %v104 = vor.u32 %v102, %v103
    %v105 = vshll.u32 920167782, %v90
    %v106 = vshrl.u32 1326507024, %v91
    %v107 = vor.u32 %v105, %v106
    %vm108 = vcmp.lt.s32.totalorder %v89, 1
    %vm109 = vcmp.lt.s32.totalorder %v89, 2
    %vm110 = vcmp.lt.s32.totalorder %v89, 3
    %vm111 = vcmp.lt.s32.totalorder %v89, 4
    %v112 = vsel %vm108, %v92, %v95
    %v113 = vsel %vm111, %v101, 2102212464
    %v114 = vsel %vm110, %v98, %v113
    %v115 = vsel %vm109, %v112, %v114
    %v116 = vsel %vm108, %v95, %v98
    %v117 = vsel %vm111, %v104, 920167782
    %v118 = vsel %vm110, %v101, %v117
    %v119 = vsel %vm109, %v116, %v118
    %v120 = vsel %vm108, %v98, %v101
    %v121 = vsel %vm111, %v107, 1326507024
    %v122 = vsel %vm110, %v104, %v121
    %v123 = vsel %vm109, %v120, %v122
    %v124 = vshll.u32 %v84, 8
    %v125 = vmul.u32.u64.compose %v124, %v123
    %v126 = vextract.low.u32 %v125
    %v127 = vextract.high.u32 %v125
    %v128 = vmul.u32.u64.compose %v124, %v119
    %v129 = vextract.low.u32 %v128
    %v130 = vextract.high.u32 %v128
    %v131 = vmul.u32 %v124, %v115
    %v132 = vadd.s32 %v127, %v129
    %vm133 = vc.u32 %v127, %v129
    %v134 = vadd.s32 %v130, 1
    %v135 = vsel %vm133, %v134, %v130
    %v136 = vadd.s32 %v131, %v135
    %v137 = vadd.s32 %v136, 536870912
    %v138 = vshrl.u32 %v137, 30
    %v139 = vshll.u32 %v138, 30
    %v140 = vsub.s32 %v136, %v139
    %vm141 = vcmp.lt.s32.totalorder %v140, 0
    %v142 = vsub.s32 0, %v140
    %v143 = vsel %vm141, %v142, %v140
    %v144 = vclz %v143
    %v145 = vsub.s32 %v144, 2
    %vm146 = vcmp.gt.s32.totalorder 0, %v145
    %v147 = vsel %vm146, 0, %v145
    %v148 = vsub.s32 32, %v147
    %v149 = vshll.u32 %v140, %v147
    %v150 = vshrl.u32 %v132, %v148
    %v151 = vor.u32 %v149, %v150
    %v152 = vsub.s32 4294967266, %v147
    %v153 = vadd.s32 %v152, 127
    %v154 = vshll.u32 %v153, 23
    %v155 = vor.u32 4788187, %v154
    %v156 = vand.u32 2147483647, %v155
    %v158 = vcvt.s32.f32 %v151
    %v159 = vmul.f32 %v158, %v156
    %v160 = vxor.u32 %v159, 2147483648
    %v161 = vsel %vm78, %v160, %v159
    %v162 = vsub.s32 4, %v138
    %v163 = vsel %vm78, %v162, %v138
    %v164 = vsel %vm77, %v75, %v161
    %v165 = vsel %vm77, 0, %v163
    %v166 = vcosq.f32.pop %v164
    %v167 = vsinq.f32.pop %v164
    %vm168 = vweird.f32 %v75
    %v169 = vand.u32 %v165, 3
    %vm170 = vcmp.lt.s32.totalorder %v169, 2
    %vm171 = vcmp.eq.s32.totalorder %v169, 0
    %v172 = vxor.u32 %v167, 2147483648
    %v173 = vsel %vm171, %v166, %v172
    %vm174 = vcmp.eq.s32.totalorder %v169, 2
    %v175 = vxor.u32 %v166, 2147483648
    %v176 = vsel %vm174, %v175, %v167
    %v177 = vsel %vm170, %v173, %v176
    %v178 = vsel %vm168, nan, %v177
    %v179 = vmul.f32 %v74, %v178
    %v180 = vand.u32 2147483647, %v75
    %vm181 = vcmp.le.f32.partialorder %v180, 0.7853982
    %vm182 = vcmp.lt.s32.totalorder %v75, 0
    %v183 = vand.u32 %v75, 2139095040
    %v184 = vshrl.u32 %v183, 23
    %v185 = vsub.s32 %v184, 127
    %v186 = vand.u32 2147483647, %v75
    %v187 = vand.u32 %v186, 8388607
    %v188 = vor.u32 %v187, 8388608
    %v189 = vsub.s32 0, %v188
    %v190 = vadd.s32 %v185, 1
    %vm191 = vcmp.gt.s32.totalorder %v190, 0
    %v192 = vsel %vm191, %v190, 0
    %v193 = vshrl.u32 %v192, 5
    %v194 = vand.u32 %v192, 31
    %v195 = vsub.s32 32, %v194
    %v196 = vshrl.u32 683565275, %v195
    %v197 = vshll.u32 683565275, %v194
    %v198 = vshrl.u32 2475754826, %v195
    %v199 = vor.u32 %v197, %v198
    %v200 = vshll.u32 2475754826, %v194
    %v201 = vshrl.u32 2131351028, %v195
    %v202 = vor.u32 %v200, %v201
    %v203 = vshll.u32 2131351028, %v194
    %v204 = vshrl.u32 2102212464, %v195
    %v205 = vor.u32 %v203, %v204
    %v206 = vshll.u32 2102212464, %v194
    %v207 = vshrl.u32 920167782, %v195
    %v208 = vor.u32 %v206, %v207
    %v209 = vshll.u32 920167782, %v194
    %v210 = vshrl.u32 1326507024, %v195
    %v211 = vor.u32 %v209, %v210
    %vm212 = vcmp.lt.s32.totalorder %v193, 1
    %vm213 = vcmp.lt.s32.totalorder %v193, 2
    %vm214 = vcmp.lt.s32.totalorder %v193, 3
    %vm215 = vcmp.lt.s32.totalorder %v193, 4
    %v216 = vsel %vm212, %v196, %v199
    %v217 = vsel %vm215, %v205, 2102212464
    %v218 = vsel %vm214, %v202, %v217
    %v219 = vsel %vm213, %v216, %v218
    %v220 = vsel %vm212, %v199, %v202
    %v221 = vsel %vm215, %v208, 920167782
    %v222 = vsel %vm214, %v205, %v221
    %v223 = vsel %vm213, %v220, %v222
    %v224 = vsel %vm212, %v202, %v205
    %v225 = vsel %vm215, %v211, 1326507024
    %v226 = vsel %vm214, %v208, %v225
    %v227 = vsel %vm213, %v224, %v226
    %v228 = vshll.u32 %v188, 8
    %v229 = vmul.u32.u64.compose %v228, %v227
    %v230 = vextract.low.u32 %v229
    %v231 = vextract.high.u32 %v229
    %v232 = vmul.u32.u64.compose %v228, %v223
    %v233 = vextract.low.u32 %v232
    %v234 = vextract.high.u32 %v232
    %v235 = vmul.u32 %v228, %v219
    %v236 = vadd.s32 %v231, %v233
    %vm237 = vc.u32 %v231, %v233
    %v238 = vadd.s32 %v234, 1
    %v239 = vsel %vm237, %v238, %v234
    %v240 = vadd.s32 %v235, %v239
    %v241 = vadd.s32 %v240, 536870912
    %v242 = vshrl.u32 %v241, 30
    %v243 = vshll.u32 %v242, 30
    %v244 = vsub.s32 %v240, %v243
    %vm245 = vcmp.lt.s32.totalorder %v244, 0
    %v246 = vsub.s32 0, %v244
    %v247 = vsel %vm245, %v246, %v244
    %v248 = vclz %v247
    %v249 = vsub.s32 %v248, 2
    %vm250 = vcmp.gt.s32.totalorder 0, %v249
    %v251 = vsel %vm250, 0, %v249
    %v252 = vsub.s32 32, %v251
    %v253 = vshll.u32 %v244, %v251
    %v254 = vshrl.u32 %v236, %v252
    %v255 = vor.u32 %v253, %v254
    %v256 = vsub.s32 4294967266, %v251
    %v257 = vadd.s32 %v256, 127
    %v258 = vshll.u32 %v257, 23
    %v259 = vor.u32 4788187, %v258
    %v260 = vand.u32 2147483647, %v259
    %v262 = vcvt.s32.f32 %v255
    %v263 = vmul.f32 %v262, %v260
    %v264 = vxor.u32 %v263, 2147483648
    %v265 = vsel %vm182, %v264, %v263
    %v266 = vsub.s32 4, %v242
    %v267 = vsel %vm182, %v266, %v242
    %v268 = vsel %vm181, %v75, %v265
    %v269 = vsel %vm181, 0, %v267
    %v270 = vcosq.f32.pop %v268
    %v271 = vsinq.f32.pop %v268
    %vm272 = vweird.f32 %v75
    %v273 = vadd.s32 %v269, 3
    %v274 = vand.u32 %v273, 3
    %vm275 = vcmp.lt.s32.totalorder %v274, 2
    %vm276 = vcmp.eq.s32.totalorder %v274, 0
    %v277 = vxor.u32 %v271, 2147483648
    %v278 = vsel %vm276, %v270, %v277
    %vm279 = vcmp.eq.s32.totalorder %v274, 2
    %v280 = vxor.u32 %v270, 2147483648
    %v281 = vsel %vm279, %v280, %v271
    %v282 = vsel %vm275, %v278, %v281
    %v283 = vsel %vm272, nan, %v282
    %v284 = vmul.f32 %v74, %v283
    %v285 = vmul.f32 %v179, 0.1
    %v286 = vmul.f32 %v284, 0.1
    %v287 = vld [vmem:[#allocation4] sm:$0xff]
    %v288 = vld [vmem:[#allocation4 + $0x8] sm:$0xff]
    %v289 = vadd.f32 %v287, %v285
    %v290 = vadd.f32 %v288, %v286
    %291 = vst [vmem:[#allocation7] sm:$0xff] %v289
    %292 = vst [vmem:[#allocation7 + $0x8] sm:$0xff] %v290
    // Predicated region
    $region10: #{tpu_custom_call.1} parent=1 // pred_check
      _
    $region11: #{tpu_custom_call.1} parent=1 // pred_check_branch
      %294 = sbr.rel (0) target = $region13
    $region12: #{tpu_custom_call.1} parent=1 // pred_region
      %s296 = ssub.s32 256, 256
      %297 = vsyncadd [#allocation6], %s296
      %s298 = sshll.u32 [#allocation7], 4
      %s299 = int_to_ptr.vmem [resolvable:$true] %s298
      %304 = dma.vmem_to_hbm [thread:$0]  %s299, 256, %s2, [#allocation6], 128, 128, 8
    $region13: #{tpu_custom_call.1} parent=1 // pred_fallthru
      _
    // Predicated region
    $region14: #{tpu_custom_call.1} parent=1 // pred_check
      _
    $region15: #{tpu_custom_call.1} parent=1 // pred_check_branch
      %306 = sbr.rel (0) target = $region17
    $region16: #{tpu_custom_call.1} parent=1 // pred_region
      %307 = dma.done [#allocation6], 256
    $region17: #{tpu_custom_call.1} parent=1 // pred_fallthru
      _
    %308 = vsyncpa [#allocation5], 1
    %309 = vsyncpa [#allocation6], 1

</llo_original>
